<compile_context>
chip_gen: v6e
topology: v6e:2x2x1
jax: 0.10.0
libtpu: 0.0.40
codegen_flags: <defaults>
</compile_context>

<pallas_src>
import jax
import jax.numpy as jnp
from jax.experimental import pallas as pl
from jax.experimental.pallas import tpu as pltpu

INPUT_DIM = 768
HIDDEN_DIM = 128
NUM_CLASSES = 2


def _round_up(n, m):
    return ((n + m - 1) // m) * m


def _hw_config():
    """Generation-dependent (tile_b, vmem_limit_bytes); conservative v7x defaults on failure."""
    try:
        info = pltpu.get_tpu_info()
        vmem = getattr(info, "vmem_capacity_bytes", None)
        if vmem is not None and vmem >= 100 * (1 << 20):
            # v5e / v6e: 128 MiB VMEM -> bigger tiles, fewer per-grid-step overheads
            return 4096, 96 * (1 << 20)
    except Exception:
        pass
    # v7x (64 MiB VMEM) or unknown: x double-buffer + intermediates stay well under budget
    return 2048, 40 * (1 << 20)


def _select_tile(B, max_tile_b):
    """Balanced batch tile (multiple of 8) so no padding pass is ever needed."""
    n_tiles = pl.cdiv(B, max_tile_b)
    if B >= 512:
        # v7x: make sure both TensorCores get at least one tile each.
        n_tiles = max(n_tiles, 2)
    return _round_up(pl.cdiv(B, n_tiles), 8)


def mlp_kernel(x_ref, w1_ref, b1_ref, w2_ref, b2_ref, o_ref):
    # Layer 1: Linear(768 -> 128) + ReLU.  bf16 MXU operands, f32 accumulate,
    # bias/ReLU in f32 (keeps v5e's f32-only VPU path happy).
    x = x_ref[...]
    if x.dtype != jnp.bfloat16:          # static dtype check; no cast if caller hands us bf16
        x = x.astype(jnp.bfloat16)
    h = jnp.dot(x, w1_ref[...], preferred_element_type=jnp.float32)
    h = jnp.maximum(h + b1_ref[...], 0.0)

    # Layer 2: Linear(128 -> 2).  Narrow-N output block (last dim == full array
    # dim) -> masked vst, hidden under the DMA slack of this mem-bound kernel.
    o = jnp.dot(h.astype(jnp.bfloat16), w2_ref[...], preferred_element_type=jnp.float32)
    o_ref[...] = o + b2_ref[...]


def prepare_params(w1, b1, w2, b2):
    """One-time param prep (outside the hot path): bf16 weights, f32 2-D biases."""
    w1_bf = w1.astype(jnp.bfloat16)
    b1r = b1.reshape(1, HIDDEN_DIM).astype(jnp.float32)
    w2_bf = w2.astype(jnp.bfloat16)
    b2r = b2.reshape(1, NUM_CLASSES).astype(jnp.float32)
    return w1_bf, b1r, w2_bf, b2r


def mlp_forward(x, prepared_params):
    """x: [B, 768] float32 or bfloat16 -> logits [B, 2] float32."""
    w1_bf, b1r, w2_bf, b2r = prepared_params
    B = x.shape[0]

    max_tile_b, vmem_limit = _hw_config()
    tile_b = _select_tile(B, max_tile_b)
    grid = (pl.cdiv(B, tile_b),)         # ragged last block; edge writes are clipped by Pallas

    cost = pl.CostEstimate(
        flops=2 * B * (INPUT_DIM * HIDDEN_DIM + HIDDEN_DIM * NUM_CLASSES),
        transcendentals=0,
        bytes_accessed=(B * INPUT_DIM * x.dtype.itemsize        # x
                        + INPUT_DIM * HIDDEN_DIM * 2            # w1 (bf16)
                        + HIDDEN_DIM * 4                        # b1 (f32)
                        + HIDDEN_DIM * NUM_CLASSES * 2          # w2 (bf16)
                        + NUM_CLASSES * 4                       # b2 (f32)
                        + B * NUM_CLASSES * 4),                 # out (f32)
    )

    out = pl.pallas_call(
        mlp_kernel,
        out_shape=jax.ShapeDtypeStruct((B, NUM_CLASSES), jnp.float32),
        grid=grid,
        in_specs=[
            pl.BlockSpec((tile_b, INPUT_DIM), lambda i: (i, 0)),        # x: tiled over batch
            pl.BlockSpec((INPUT_DIM, HIDDEN_DIM), lambda i: (0, 0)),    # w1: VMEM-resident
            pl.BlockSpec((1, HIDDEN_DIM), lambda i: (0, 0)),            # b1: resident
            pl.BlockSpec((HIDDEN_DIM, NUM_CLASSES), lambda i: (0, 0)),  # w2: resident
            pl.BlockSpec((1, NUM_CLASSES), lambda i: (0, 0)),           # b2: resident
        ],
        out_specs=pl.BlockSpec((tile_b, NUM_CLASSES), lambda i: (i, 0)),
        compiler_params=pltpu.CompilerParams(
            dimension_semantics=("parallel",),   # shard batch tiles across v7x's 2 TCs
            vmem_limit_bytes=vmem_limit,
        ),
        cost_estimate=cost,
    )(x, w1_bf, b1r, w2_bf, b2r)

    return out


def init_params(key):
    """Deterministic init mimicking torch.nn.Linear defaults (U(-1/sqrt(fan_in), +))."""
    k1, k2, k3, k4 = jax.random.split(key, 4)
    bound1 = 1.0 / jnp.sqrt(jnp.float32(INPUT_DIM))
    bound2 = 1.0 / jnp.sqrt(jnp.float32(HIDDEN_DIM))
    # stored as [in, out] (pre-transposed vs torch's [out, in])
    w1 = jax.random.uniform(k1, (INPUT_DIM, HIDDEN_DIM), jnp.float32, -bound1, bound1)
    b1 = jax.random.uniform(k2, (HIDDEN_DIM,), jnp.float32, -bound1, bound1)
    w2 = jax.random.uniform(k3, (HIDDEN_DIM, NUM_CLASSES), jnp.float32, -bound2, bound2)
    b2 = jax.random.uniform(k4, (NUM_CLASSES,), jnp.float32, -bound2, bound2)
    return w1, b1, w2, b2


if __name__ == "__main__":
    key = jax.random.PRNGKey(0)
    kx, kp = jax.random.split(key)
    w1, b1, w2, b2 = init_params(kp)
    prepared = prepare_params(w1, b1, w2, b2)   # one-time, outside the hot path

    def ref_fn(xv):
        return jnp.maximum(xv @ w1 + b1, 0.0) @ w2 + b2

    # Small batches: one multiple-of-8 and one ragged (exercises the edge-block path).
    for B in (8, 13):
        x = jax.random.normal(jax.random.fold_in(kx, B), (B, INPUT_DIM), jnp.float32)
        logits = mlp_forward(x, prepared)
        jax.block_until_ready(logits)
        ref = ref_fn(x)
        assert logits.shape == (B, NUM_CLASSES)
        # bf16 MXU operands with f32 accumulation -> bf16-appropriate tolerance.
        assert jnp.allclose(logits, ref, atol=5e-2, rtol=5e-2), (
            f"B={B}: max abs err {jnp.max(jnp.abs(logits - ref))}")

    print("KERNEL_OK")
</pallas_src>

<mosaic_0001>
module attributes {stable_mosaic.version = 11 : i64} {
  func.func @mlp_kernel(%arg0: i32, %arg1: memref<8x768xf32, #tpu.memory_space<vmem>>, %arg2: memref<768x128xbf16, #tpu.memory_space<vmem>>, %arg3: memref<1x128xf32, #tpu.memory_space<vmem>>, %arg4: memref<128x2xbf16, #tpu.memory_space<vmem>>, %arg5: memref<1x2xf32, #tpu.memory_space<vmem>>, %arg6: memref<8x2xf32, #tpu.memory_space<vmem>>) attributes {dimension_semantics = [#tpu.dimension_semantics<parallel>], iteration_bounds = array<i64: 1>, scalar_prefetch = 0 : i64, scratch_operands = 0 : i64, tpu.core_type = #tpu.core_type<tc>, window_params = [{transform_indices = @transform_0, window_bounds = array<i64: 8, 768>}, {pipeline_mode = #tpu.pipeline_mode<synchronous>, transform_indices = @transform_1, window_bounds = array<i64: 768, 128>}, {pipeline_mode = #tpu.pipeline_mode<synchronous>, transform_indices = @transform_2, window_bounds = array<i64: 1, 128>}, {pipeline_mode = #tpu.pipeline_mode<synchronous>, transform_indices = @transform_3, window_bounds = array<i64: 128, 2>}, {pipeline_mode = #tpu.pipeline_mode<synchronous>, transform_indices = @transform_4, window_bounds = array<i64: 1, 2>}, {transform_indices = @transform_5, window_bounds = array<i64: 8, 2>}]} {
    %c0 = arith.constant 0 : index
    %c0_0 = arith.constant 0 : index
    %0 = vector.load %arg1[%c0, %c0_0] : memref<8x768xf32, #tpu.memory_space<vmem>>, vector<8x768xf32>
    %1 = arith.truncf %0 : vector<8x768xf32> to vector<8x768xbf16>
    %c0_1 = arith.constant 0 : index
    %c0_2 = arith.constant 0 : index
    %2 = vector.load %arg2[%c0_1, %c0_2] : memref<768x128xbf16, #tpu.memory_space<vmem>>, vector<768x128xbf16>
    %cst = arith.constant dense<0.000000e+00> : vector<8x128xf32>
    %3 = tpu.matmul %1, %2, %cst {dimension_numbers = #tpu.dot_dimension_numbers<[1], [0], [0], [1], [0, 0, 1, 1], [], []>} : vector<8x768xbf16>, vector<768x128xbf16>, vector<8x128xf32> -> vector<8x128xf32>
    %c0_3 = arith.constant 0 : index
    %c0_4 = arith.constant 0 : index
    %4 = vector.load %arg3[%c0_3, %c0_4] : memref<1x128xf32, #tpu.memory_space<vmem>>, vector<1x128xf32>
    %5 = vector.broadcast %4 : vector<1x128xf32> to vector<8x128xf32>
    %6 = arith.addf %3, %5 : vector<8x128xf32>
    %cst_5 = arith.constant 0.000000e+00 : f32
    %7 = vector.broadcast %cst_5 : f32 to vector<8x128xf32>
    %8 = arith.maximumf %6, %7 : vector<8x128xf32>
    %9 = arith.truncf %8 : vector<8x128xf32> to vector<8x128xbf16>
    %c0_6 = arith.constant 0 : index
    %c0_7 = arith.constant 0 : index
    %10 = vector.load %arg4[%c0_6, %c0_7] : memref<128x2xbf16, #tpu.memory_space<vmem>>, vector<128x2xbf16>
    %cst_8 = arith.constant dense<0.000000e+00> : vector<8x2xf32>
    %11 = tpu.matmul %9, %10, %cst_8 {dimension_numbers = #tpu.dot_dimension_numbers<[1], [0], [0], [1], [0, 0, 1, 1], [], []>} : vector<8x128xbf16>, vector<128x2xbf16>, vector<8x2xf32> -> vector<8x2xf32>
    %c0_9 = arith.constant 0 : index
    %c0_10 = arith.constant 0 : index
    %12 = vector.load %arg5[%c0_9, %c0_10] : memref<1x2xf32, #tpu.memory_space<vmem>>, vector<1x2xf32>
    %13 = vector.broadcast %12 : vector<1x2xf32> to vector<8x2xf32>
    %14 = arith.addf %11, %13 : vector<8x2xf32>
    %c0_11 = arith.constant 0 : index
    %c0_12 = arith.constant 0 : index
    %15 = vector.load %arg6[%c0_11, %c0_12] : memref<8x2xf32, #tpu.memory_space<vmem>>, vector<8x2xf32>
    tpu.vector_store %arg6[%c0_11, %c0_12], %14 {strides = array<i32>} : memref<8x2xf32, #tpu.memory_space<vmem>>, vector<8x2xf32>,
    return
  }
  func.func @transform_0(%arg0: i32) -> (i32, i32) {
    %c0_i32 = arith.constant 0 : i32
    %c0_i32_0 = arith.constant 0 : i32
    return %arg0, %c0_i32 : i32, i32
  }
  func.func @transform_1(%arg0: i32) -> (i32, i32) {
    %c0_i32 = arith.constant 0 : i32
    %c0_i32_0 = arith.constant 0 : i32
    %c0_i32_1 = arith.constant 0 : i32
    return %c0_i32, %c0_i32_0 : i32, i32
  }
  func.func @transform_2(%arg0: i32) -> (i32, i32) {
    %c0_i32 = arith.constant 0 : i32
    %c0_i32_0 = arith.constant 0 : i32
    %c0_i32_1 = arith.constant 0 : i32
    return %c0_i32, %c0_i32_0 : i32, i32
  }
  func.func @transform_3(%arg0: i32) -> (i32, i32) {
    %c0_i32 = arith.constant 0 : i32
    %c0_i32_0 = arith.constant 0 : i32
    %c0_i32_1 = arith.constant 0 : i32
    return %c0_i32, %c0_i32_0 : i32, i32
  }
  func.func @transform_4(%arg0: i32) -> (i32, i32) {
    %c0_i32 = arith.constant 0 : i32
    %c0_i32_0 = arith.constant 0 : i32
    %c0_i32_1 = arith.constant 0 : i32
    return %c0_i32, %c0_i32_0 : i32, i32
  }
  func.func @transform_5(%arg0: i32) -> (i32, i32) {
    %c0_i32 = arith.constant 0 : i32
    %c0_i32_0 = arith.constant 0 : i32
    return %arg0, %c0_i32 : i32, i32
  }
}

</mosaic_0001>

<llo_original>
// kernel: tpu_custom_call.1
$region0: #{tpu_custom_call.1}
  #allocation0 [shape = 'u32[]', space=smem, size = 0x4, offset = 0x4, fixed_abs, tag = 'smem constant byte address 0x4 - core index']
  #allocation1 [shape = 'u32[144,128]{1,0:T(1,128)}', space=vmem, size = 0x12000, scoped, tag = 'internal scratch']
  %s0 = inlined_call_operand.vmem [shape: f32[8,768], index: 0, kind: input, shape index: {}]
  %s1 = inlined_call_operand.hbm [shape: bf16[768,128], index: 1, kind: input, shape index: {}]
  %s2 = inlined_call_operand.vmem [shape: f32[1,128], index: 2, kind: input, shape index: {}]
  %s3 = inlined_call_operand.vmem [shape: bf16[128,2], index: 3, kind: input, shape index: {}]
  %s4 = inlined_call_operand.vmem [shape: f32[1,2], index: 4, kind: input, shape index: {}]
  %s5 = inlined_call_operand.vmem [shape: f32[8,2], index: 5, kind: output, shape index: {}]
  %s6 = sld [smem:[#allocation0]]
  $region34: #{tpu_custom_call.1} parent=0
    _
  %s8 = ssub.s32 1, %s6
  %s9 = scalar_select 0, %s8, %s6
  $region1: #{tpu_custom_call.1} parent=0
    #allocation2 [shape = 'u8[196608]{0}', space=vmem, size = 0x30000, scoped, tag = 'input window, operand 1, single buffered']
    #allocation3 [shape = 's32[1]{0}', space=sflag, size = 0x4, scoped, tag = 'scoped memory for tpu_custom_call.1']
    %10 = vsyncpa [#allocation3], 0
    // Predicated region
    $region2: #{tpu_custom_call.1} parent=1 // pred_check
      _
    $region3: #{tpu_custom_call.1} parent=1 // pred_check_branch
      %12 = sbr.rel (0) target = $region5
    $region4: #{tpu_custom_call.1} parent=1 // pred_region
      _
    $region5: #{tpu_custom_call.1} parent=1 // pred_fallthru
      _
    // Predicated region
    $region6: #{tpu_custom_call.1} parent=1 // pred_check
      _
    $region7: #{tpu_custom_call.1} parent=1 // pred_check_branch
      %14 = sbr.rel (0) target = $region9
    $region8: #{tpu_custom_call.1} parent=1 // pred_region
      %s16 = ssub.s32 6144, 6144
      %17 = vsyncadd [#allocation3], %s16
      %s18 = sshll.u32 [#allocation2], 4
      %s19 = int_to_ptr.vmem [resolvable:$true] %s18
      %24 = dma.hbm_to_vmem [thread:$0]  %s1, 6144, %s19, [#allocation3], 64, 64, 4
    $region9: #{tpu_custom_call.1} parent=1 // pred_fallthru
      _
    // Predicated region
    $region10: #{tpu_custom_call.1} parent=1 // pred_check
      _
    $region11: #{tpu_custom_call.1} parent=1 // pred_check_branch
      %26 = sbr.rel (0) target = $region13
    $region12: #{tpu_custom_call.1} parent=1 // pred_region
      _
    $region13: #{tpu_custom_call.1} parent=1 // pred_fallthru
      _
    // Predicated region
    $region14: #{tpu_custom_call.1} parent=1 // pred_check
      _
    $region15: #{tpu_custom_call.1} parent=1 // pred_check_branch
      %28 = sbr.rel (0) target = $region17
    $region16: #{tpu_custom_call.1} parent=1 // pred_region
      _
    $region17: #{tpu_custom_call.1} parent=1 // pred_fallthru
      _
    // Predicated region
    $region18: #{tpu_custom_call.1} parent=1 // pred_check
      _
    $region19: #{tpu_custom_call.1} parent=1 // pred_check_branch
      %30 = sbr.rel (0) target = $region21
    $region20: #{tpu_custom_call.1} parent=1 // pred_region
      _
    $region21: #{tpu_custom_call.1} parent=1 // pred_fallthru
      _
    // Predicated region
    $region22: #{tpu_custom_call.1} parent=1 // pred_check
      _
    $region23: #{tpu_custom_call.1} parent=1 // pred_check_branch
      %32 = sbr.rel (0) target = $region25
    $region24: #{tpu_custom_call.1} parent=1 // pred_region
      %33 = dma.done [#allocation3], 6144
    $region25: #{tpu_custom_call.1} parent=1 // pred_fallthru
      _
    %v35 = vld [vmem:[%s0] sm:$0xff]
    %v36 = vld [vmem:[%s0 + $0x8] sm:$0xff]
    %v37 = vld [vmem:[%s0 + $0x10] sm:$0xff]
    %v38 = vld [vmem:[%s0 + $0x18] sm:$0xff]
    %v39 = vld [vmem:[%s0 + $0x20] sm:$0xff]
    %v40 = vld [vmem:[%s0 + $0x28] sm:$0xff]
    %v41 = vpack.c.bf16 %v35, %v35
    %v42 = vpack.c.bf16 %v36, %v36
    %v43 = vpack.c.bf16 %v37, %v37
    %v44 = vpack.c.bf16 %v38, %v38
    %v45 = vpack.c.bf16 %v39, %v39
    %v46 = vpack.c.bf16 %v40, %v40
    %v47 = vld [vmem:[#allocation2] sm:$0xf]
    %v48 = vld [vmem:[#allocation2 + $0x4] sm:$0xf]
    %v49 = vld [vmem:[#allocation2 + $0x8] sm:$0xf]
    %v50 = vld [vmem:[#allocation2 + $0xc] sm:$0xf]
    %v51 = vld [vmem:[#allocation2 + $0x10] sm:$0xf]
    %v52 = vld [vmem:[#allocation2 + $0x14] sm:$0xf]
    %v53 = vld [vmem:[#allocation2 + $0x18] sm:$0xf]
    %v54 = vld [vmem:[#allocation2 + $0x1c] sm:$0xf]
    %v55 = vld [vmem:[#allocation2 + $0x20] sm:$0xf]
    %v56 = vld [vmem:[#allocation2 + $0x24] sm:$0xf]
    %v57 = vld [vmem:[#allocation2 + $0x28] sm:$0xf]
    %v58 = vld [vmem:[#allocation2 + $0x2c] sm:$0xf]
    %v59 = vld [vmem:[#allocation2 + $0x30] sm:$0xf]
    %v60 = vld [vmem:[#allocation2 + $0x34] sm:$0xf]
    %v61 = vld [vmem:[#allocation2 + $0x38] sm:$0xf]
    %v62 = vld [vmem:[#allocation2 + $0x3c] sm:$0xf]
    %v63 = vld [vmem:[#allocation2 + $0x40] sm:$0xf]
    %v64 = vld [vmem:[#allocation2 + $0x44] sm:$0xf]
    %v65 = vld [vmem:[#allocation2 + $0x48] sm:$0xf]
    %v66 = vld [vmem:[#allocation2 + $0x4c] sm:$0xf]
    %v67 = vld [vmem:[#allocation2 + $0x50] sm:$0xf]
    %v68 = vld [vmem:[#allocation2 + $0x54] sm:$0xf]
    %v69 = vld [vmem:[#allocation2 + $0x58] sm:$0xf]
    %v70 = vld [vmem:[#allocation2 + $0x5c] sm:$0xf]
    %v71 = vld [vmem:[#allocation2 + $0x60] sm:$0xf]
    %v72 = vld [vmem:[#allocation2 + $0x64] sm:$0xf]
    %v73 = vld [vmem:[#allocation2 + $0x68] sm:$0xf]
    %v74 = vld [vmem:[#allocation2 + $0x6c] sm:$0xf]
    %v75 = vld [vmem:[#allocation2 + $0x70] sm:$0xf]
    %v76 = vld [vmem:[#allocation2 + $0x74] sm:$0xf]
    %v77 = vld [vmem:[#allocation2 + $0x78] sm:$0xf]
    %v78 = vld [vmem:[#allocation2 + $0x7c] sm:$0xf]
    %v79 = vld [vmem:[#allocation2 + $0x80] sm:$0xf]
    %v80 = vld [vmem:[#allocation2 + $0x84] sm:$0xf]
    %v81 = vld [vmem:[#allocation2 + $0x88] sm:$0xf]
    %v82 = vld [vmem:[#allocation2 + $0x8c] sm:$0xf]
    %v83 = vld [vmem:[#allocation2 + $0x90] sm:$0xf]
    %v84 = vld [vmem:[#allocation2 + $0x94] sm:$0xf]
    %v85 = vld [vmem:[#allocation2 + $0x98] sm:$0xf]
    %v86 = vld [vmem:[#allocation2 + $0x9c] sm:$0xf]
    %v87 = vld [vmem:[#allocation2 + $0xa0] sm:$0xf]
    %v88 = vld [vmem:[#allocation2 + $0xa4] sm:$0xf]
    %v89 = vld [vmem:[#allocation2 + $0xa8] sm:$0xf]
    %v90 = vld [vmem:[#allocation2 + $0xac] sm:$0xf]
    %v91 = vld [vmem:[#allocation2 + $0xb0] sm:$0xf]
    %v92 = vld [vmem:[#allocation2 + $0xb4] sm:$0xf]
    %v93 = vld [vmem:[#allocation2 + $0xb8] sm:$0xf]
    %v94 = vld [vmem:[#allocation2 + $0xbc] sm:$0xf]
    %v95 = vld [vmem:[#allocation2 + $0xc0] sm:$0xf]
    %v96 = vld [vmem:[#allocation2 + $0xc4] sm:$0xf]
    %v97 = vld [vmem:[#allocation2 + $0xc8] sm:$0xf]
    %v98 = vld [vmem:[#allocation2 + $0xcc] sm:$0xf]
    %v99 = vld [vmem:[#allocation2 + $0xd0] sm:$0xf]
    %v100 = vld [vmem:[#allocation2 + $0xd4] sm:$0xf]
    %v101 = vld [vmem:[#allocation2 + $0xd8] sm:$0xf]
    %v102 = vld [vmem:[#allocation2 + $0xdc] sm:$0xf]
    %v103 = vld [vmem:[#allocation2 + $0xe0] sm:$0xf]
    %v104 = vld [vmem:[#allocation2 + $0xe4] sm:$0xf]
    %v105 = vld [vmem:[#allocation2 + $0xe8] sm:$0xf]
    %v106 = vld [vmem:[#allocation2 + $0xec] sm:$0xf]
    %v107 = vld [vmem:[#allocation2 + $0xf0] sm:$0xf]
    %v108 = vld [vmem:[#allocation2 + $0xf4] sm:$0xf]
    %v109 = vld [vmem:[#allocation2 + $0xf8] sm:$0xf]
    %v110 = vld [vmem:[#allocation2 + $0xfc] sm:$0xf]
    %v111 = vld [vmem:[#allocation2 + $0x100] sm:$0xf]
    %v112 = vld [vmem:[#allocation2 + $0x104] sm:$0xf]
    %v113 = vld [vmem:[#allocation2 + $0x108] sm:$0xf]
    %v114 = vld [vmem:[#allocation2 + $0x10c] sm:$0xf]
    %v115 = vld [vmem:[#allocation2 + $0x110] sm:$0xf]
    %v116 = vld [vmem:[#allocation2 + $0x114] sm:$0xf]
    %v117 = vld [vmem:[#allocation2 + $0x118] sm:$0xf]
    %v118 = vld [vmem:[#allocation2 + $0x11c] sm:$0xf]
    %v119 = vld [vmem:[#allocation2 + $0x120] sm:$0xf]
    %v120 = vld [vmem:[#allocation2 + $0x124] sm:$0xf]
    %v121 = vld [vmem:[#allocation2 + $0x128] sm:$0xf]
    %v122 = vld [vmem:[#allocation2 + $0x12c] sm:$0xf]
    %v123 = vld [vmem:[#allocation2 + $0x130] sm:$0xf]
    %v124 = vld [vmem:[#allocation2 + $0x134] sm:$0xf]
    %v125 = vld [vmem:[#allocation2 + $0x138] sm:$0xf]
    %v126 = vld [vmem:[#allocation2 + $0x13c] sm:$0xf]
    %v127 = vld [vmem:[#allocation2 + $0x140] sm:$0xf]
    %v128 = vld [vmem:[#allocation2 + $0x144] sm:$0xf]
    %v129 = vld [vmem:[#allocation2 + $0x148] sm:$0xf]
    %v130 = vld [vmem:[#allocation2 + $0x14c] sm:$0xf]
    %v131 = vld [vmem:[#allocation2 + $0x150] sm:$0xf]
    %v132 = vld [vmem:[#allocation2 + $0x154] sm:$0xf]
    %v133 = vld [vmem:[#allocation2 + $0x158] sm:$0xf]
    %v134 = vld [vmem:[#allocation2 + $0x15c] sm:$0xf]
    %v135 = vld [vmem:[#allocation2 + $0x160] sm:$0xf]
    %v136 = vld [vmem:[#allocation2 + $0x164] sm:$0xf]
    %v137 = vld [vmem:[#allocation2 + $0x168] sm:$0xf]
    %v138 = vld [vmem:[#allocation2 + $0x16c] sm:$0xf]
    %v139 = vld [vmem:[#allocation2 + $0x170] sm:$0xf]
    %v140 = vld [vmem:[#allocation2 + $0x174] sm:$0xf]
    %v141 = vld [vmem:[#allocation2 + $0x178] sm:$0xf]
    %v142 = vld [vmem:[#allocation2 + $0x17c] sm:$0xf]
    %v143 = vld [vmem:[%s2] sm:$0x1]
    %v145 = vlaneseq
    %v146 = vshrl.u32 %v145, 7
    %v147 = vsub.s32 0, %v146
    %v148 = vrot.slane %v143, %v147
    %v246 = vunpack.c.l.b16 %v47
    %v247 = vunpack.c.l.b16 %v48
    %v248 = vunpack.c.l.b16 %v49
    %v249 = vunpack.c.l.b16 %v50
    %v250 = vunpack.c.l.b16 %v51
    %v251 = vunpack.c.l.b16 %v52
    %v252 = vunpack.c.l.b16 %v53
    %v253 = vunpack.c.l.b16 %v54
    %v254 = vunpack.c.l.b16 %v55
    %v255 = vunpack.c.l.b16 %v56
    %v256 = vunpack.c.l.b16 %v57
    %v257 = vunpack.c.l.b16 %v58
    %v258 = vunpack.c.l.b16 %v59
    %v259 = vunpack.c.l.b16 %v60
    %v260 = vunpack.c.l.b16 %v61
    %v261 = vunpack.c.l.b16 %v62
    %v262 = vunpack.c.l.b16 %v63
    %v263 = vunpack.c.l.b16 %v64
    %v264 = vunpack.c.l.b16 %v65
    %v265 = vunpack.c.l.b16 %v66
    %v266 = vunpack.c.l.b16 %v67
    %v267 = vunpack.c.l.b16 %v68
    %v268 = vunpack.c.l.b16 %v69
    %v269 = vunpack.c.l.b16 %v70
    %v270 = vunpack.c.l.b16 %v71
    %v271 = vunpack.c.l.b16 %v72
    %v272 = vunpack.c.l.b16 %v73
    %v273 = vunpack.c.l.b16 %v74
    %v274 = vunpack.c.l.b16 %v75
    %v275 = vunpack.c.l.b16 %v76
    %v276 = vunpack.c.l.b16 %v77
    %v277 = vunpack.c.l.b16 %v78
    %v278 = vunpack.c.l.b16 %v79
    %v279 = vunpack.c.l.b16 %v80
    %v280 = vunpack.c.l.b16 %v81
    %v281 = vunpack.c.l.b16 %v82
    %v282 = vunpack.c.l.b16 %v83
    %v283 = vunpack.c.l.b16 %v84
    %v284 = vunpack.c.l.b16 %v85
    %v285 = vunpack.c.l.b16 %v86
    %v286 = vunpack.c.l.b16 %v87
    %v287 = vunpack.c.l.b16 %v88
    %v288 = vunpack.c.l.b16 %v89
    %v289 = vunpack.c.l.b16 %v90
    %v290 = vunpack.c.l.b16 %v91
    %v291 = vunpack.c.l.b16 %v92
    %v292 = vunpack.c.l.b16 %v93
    %v293 = vunpack.c.l.b16 %v94
    %v294 = vunpack.c.l.b16 %v95
    %v295 = vunpack.c.l.b16 %v96
    %v296 = vunpack.c.l.b16 %v97
    %v297 = vunpack.c.l.b16 %v98
    %v298 = vunpack.c.l.b16 %v99
    %v299 = vunpack.c.l.b16 %v100
    %v300 = vunpack.c.l.b16 %v101
    %v301 = vunpack.c.l.b16 %v102
    %v302 = vunpack.c.l.b16 %v103
    %v303 = vunpack.c.l.b16 %v104
    %v304 = vunpack.c.l.b16 %v105
    %v305 = vunpack.c.l.b16 %v106
    %v306 = vunpack.c.l.b16 %v107
    %v307 = vunpack.c.l.b16 %v108
    %v308 = vunpack.c.l.b16 %v109
    %v309 = vunpack.c.l.b16 %v110
    %v310 = vunpack.c.l.b16 %v111
    %v311 = vunpack.c.l.b16 %v112
    %v312 = vunpack.c.l.b16 %v113
    %v313 = vunpack.c.l.b16 %v114
    %v314 = vunpack.c.l.b16 %v115
    %v315 = vunpack.c.l.b16 %v116
    %v316 = vunpack.c.l.b16 %v117
    %v317 = vunpack.c.l.b16 %v118
    %v318 = vunpack.c.l.b16 %v119
    %v319 = vunpack.c.l.b16 %v120
    %v320 = vunpack.c.l.b16 %v121
    %v321 = vunpack.c.l.b16 %v122
    %v322 = vunpack.c.l.b16 %v123
    %v323 = vunpack.c.l.b16 %v124
    %v324 = vunpack.c.l.b16 %v125
    %v325 = vunpack.c.l.b16 %v126
    %v326 = vunpack.c.l.b16 %v127
    %v327 = vunpack.c.l.b16 %v128
    %v328 = vunpack.c.l.b16 %v129
    %v329 = vunpack.c.l.b16 %v130
    %v330 = vunpack.c.l.b16 %v131
    %v331 = vunpack.c.l.b16 %v132
    %v332 = vunpack.c.l.b16 %v133
    %v333 = vunpack.c.l.b16 %v134
    %v334 = vunpack.c.l.b16 %v135
    %v335 = vunpack.c.l.b16 %v136
    %v336 = vunpack.c.l.b16 %v137
    %v337 = vunpack.c.l.b16 %v138
    %v338 = vunpack.c.l.b16 %v139
    %v339 = vunpack.c.l.b16 %v140
    %v340 = vunpack.c.l.b16 %v141
    %v341 = vunpack.c.l.b16 %v142
    %v342 = vpack.c.b16 %v247, %v246
    %v343 = vpack.c.b16 %v249, %v248
    %v344 = vpack.c.b16 %v251, %v250
    %v345 = vpack.c.b16 %v253, %v252
    %v346 = vpack.c.b16 %v255, %v254
    %v347 = vpack.c.b16 %v257, %v256
    %v348 = vpack.c.b16 %v259, %v258
    %v349 = vpack.c.b16 %v261, %v260
    %v350 = vpack.c.b16 %v263, %v262
    %v351 = vpack.c.b16 %v265, %v264
    %v352 = vpack.c.b16 %v267, %v266
    %v353 = vpack.c.b16 %v269, %v268
    %v354 = vpack.c.b16 %v271, %v270
    %v355 = vpack.c.b16 %v273, %v272
    %v356 = vpack.c.b16 %v275, %v274
    %v357 = vpack.c.b16 %v277, %v276
    %v358 = vpack.c.b16 %v279, %v278
    %v359 = vpack.c.b16 %v281, %v280
    %v360 = vpack.c.b16 %v283, %v282
    %v361 = vpack.c.b16 %v285, %v284
    %v362 = vpack.c.b16 %v287, %v286
    %v363 = vpack.c.b16 %v289, %v288
    %v364 = vpack.c.b16 %v291, %v290
    %v365 = vpack.c.b16 %v293, %v292
    %v366 = vpack.c.b16 %v295, %v294
    %v367 = vpack.c.b16 %v297, %v296
    %v368 = vpack.c.b16 %v299, %v298
    %v369 = vpack.c.b16 %v301, %v300
    %v370 = vpack.c.b16 %v303, %v302
    %v371 = vpack.c.b16 %v305, %v304
    %v372 = vpack.c.b16 %v307, %v306
    %v373 = vpack.c.b16 %v309, %v308
    %v374 = vpack.c.b16 %v311, %v310
    %v375 = vpack.c.b16 %v313, %v312
    %v376 = vpack.c.b16 %v315, %v314
    %v377 = vpack.c.b16 %v317, %v316
    %v378 = vpack.c.b16 %v319, %v318
    %v379 = vpack.c.b16 %v321, %v320
    %v380 = vpack.c.b16 %v323, %v322
    %v381 = vpack.c.b16 %v325, %v324
    %v382 = vpack.c.b16 %v327, %v326
    %v383 = vpack.c.b16 %v329, %v328
    %v384 = vpack.c.b16 %v331, %v330
    %v385 = vpack.c.b16 %v333, %v332
    %v386 = vpack.c.b16 %v335, %v334
    %v387 = vpack.c.b16 %v337, %v336
    %v388 = vpack.c.b16 %v339, %v338
    %v389 = vpack.c.b16 %v341, %v340
    %438 = vmatprep.subr.bf16.mxu0 0
    %439 = vmatpush1.bf16.msra.mxu0 %v349
    %440 = vmatprep.subr.bf16.mxu0 0
    %441 = vmatpush1.bf16.msra.mxu0 %v348
    %442 = vmatprep.subr.bf16.mxu0 0
    %443 = vmatpush1.bf16.msra.mxu0 %v347
    %444 = vmatprep.subr.bf16.mxu0 0
    %445 = vmatpush1.bf16.msra.mxu0 %v346
    %446 = vmatprep.subr.bf16.mxu0 0
    %447 = vmatpush1.bf16.msra.mxu0 %v345
    %448 = vmatprep.subr.bf16.mxu0 0
    %449 = vmatpush1.bf16.msra.mxu0 %v344
    %450 = vmatprep.subr.bf16.mxu0 0
    %451 = vmatpush1.bf16.msra.mxu0 %v343
    %452 = vmatprep.subr.bf16.mxu0 0
    %453 = vmatpush1.bf16.msra.mxu0 %v342
    %454 = vmatprep.subr.bf16.mxu0 0
    %455 = vmatpush2.bf16.msra.mxu0 %v357
    %456 = vmatprep.subr.bf16.mxu0 0
    %457 = vmatpush2.bf16.msra.mxu0 %v356
    %458 = vmatprep.subr.bf16.mxu0 0
    %459 = vmatpush2.bf16.msra.mxu0 %v355
    %460 = vmatprep.subr.bf16.mxu0 0
    %461 = vmatpush2.bf16.msra.mxu0 %v354
    %462 = vmatprep.subr.bf16.mxu0 0
    %463 = vmatpush2.bf16.msra.mxu0 %v353
    %464 = vmatprep.subr.bf16.mxu0 0
    %465 = vmatpush2.bf16.msra.mxu0 %v352
    %466 = vmatprep.subr.bf16.mxu0 0
    %467 = vmatpush2.bf16.msra.mxu0 %v351
    %468 = vmatprep.subr.bf16.mxu0 0
    %469 = vmatpush2.bf16.msra.mxu0 %v350
    %470 = vmatprep.mubr.bf16.mxu0 %v42
    %471 = vmatmul.mubr.bf16.gmra.mxu0 %v41
    %v472 = vpop.f32.mrf.mxu0
    %v473 = vadd.f32 %v148, %v472
    %v474 = vpop.f32.mrf.mxu0
    %v475 = vpop.f32.mrf.mxu0
    %v476 = vpop.f32.mrf.mxu0
    %477 = vdwg.mxu0
    %478 = vmatprep.subr.bf16.mxu0 0
    %479 = vmatpush1.bf16.msra.mxu0 %v365
    %480 = vmatprep.subr.bf16.mxu0 0
    %481 = vmatpush1.bf16.msra.mxu0 %v364
    %482 = vmatprep.subr.bf16.mxu0 0
    %483 = vmatpush1.bf16.msra.mxu0 %v363
    %484 = vmatprep.subr.bf16.mxu0 0
    %485 = vmatpush1.bf16.msra.mxu0 %v362
    %486 = vmatprep.subr.bf16.mxu0 0
    %487 = vmatpush1.bf16.msra.mxu0 %v361
    %488 = vmatprep.subr.bf16.mxu0 0
    %489 = vmatpush1.bf16.msra.mxu0 %v360
    %490 = vmatprep.subr.bf16.mxu0 0
    %491 = vmatpush1.bf16.msra.mxu0 %v359
    %492 = vmatprep.subr.bf16.mxu0 0
    %493 = vmatpush1.bf16.msra.mxu0 %v358
    %494 = vmatprep.subr.bf16.mxu0 0
    %495 = vmatpush2.bf16.msra.mxu0 %v373
    %496 = vmatprep.subr.bf16.mxu0 0
    %497 = vmatpush2.bf16.msra.mxu0 %v372
    %498 = vmatprep.subr.bf16.mxu0 0
    %499 = vmatpush2.bf16.msra.mxu0 %v371
    %500 = vmatprep.subr.bf16.mxu0 0
    %501 = vmatpush2.bf16.msra.mxu0 %v370
    %502 = vmatprep.subr.bf16.mxu0 0
    %503 = vmatpush2.bf16.msra.mxu0 %v369
    %504 = vmatprep.subr.bf16.mxu0 0
    %505 = vmatpush2.bf16.msra.mxu0 %v368
    %506 = vmatprep.subr.bf16.mxu0 0
    %507 = vmatpush2.bf16.msra.mxu0 %v367
    %508 = vmatprep.subr.bf16.mxu0 0
    %509 = vmatpush2.bf16.msra.mxu0 %v366
    %510 = vmatprep.mubr.bf16.mxu0 %v44
    %511 = vmatmul.mubr.bf16.gmra.mxu0 %v43
    %v512 = vpop.f32.mrf.mxu0
    %v513 = vadd.f32 %v473, %v512
    %v514 = vpop.f32.mrf.mxu0
    %v515 = vpop.f32.mrf.mxu0
    %v516 = vpop.f32.mrf.mxu0
    %517 = vdwg.mxu0
    %518 = vmatprep.subr.bf16.mxu0 0
    %519 = vmatpush1.bf16.msra.mxu0 %v381
    %520 = vmatprep.subr.bf16.mxu0 0
    %521 = vmatpush1.bf16.msra.mxu0 %v380
    %522 = vmatprep.subr.bf16.mxu0 0
    %523 = vmatpush1.bf16.msra.mxu0 %v379
    %524 = vmatprep.subr.bf16.mxu0 0
    %525 = vmatpush1.bf16.msra.mxu0 %v378
    %526 = vmatprep.subr.bf16.mxu0 0
    %527 = vmatpush1.bf16.msra.mxu0 %v377
    %528 = vmatprep.subr.bf16.mxu0 0
    %529 = vmatpush1.bf16.msra.mxu0 %v376
    %530 = vmatprep.subr.bf16.mxu0 0
    %531 = vmatpush1.bf16.msra.mxu0 %v375
    %532 = vmatprep.subr.bf16.mxu0 0
    %533 = vmatpush1.bf16.msra.mxu0 %v374
    %534 = vmatprep.subr.bf16.mxu0 0
    %535 = vmatpush2.bf16.msra.mxu0 %v389
    %536 = vmatprep.subr.bf16.mxu0 0
    %537 = vmatpush2.bf16.msra.mxu0 %v388
    %538 = vmatprep.subr.bf16.mxu0 0
    %539 = vmatpush2.bf16.msra.mxu0 %v387
    %540 = vmatprep.subr.bf16.mxu0 0
    %541 = vmatpush2.bf16.msra.mxu0 %v386
    %542 = vmatprep.subr.bf16.mxu0 0
    %543 = vmatpush2.bf16.msra.mxu0 %v385
    %544 = vmatprep.subr.bf16.mxu0 0
    %545 = vmatpush2.bf16.msra.mxu0 %v384
    %546 = vmatprep.subr.bf16.mxu0 0
    %547 = vmatpush2.bf16.msra.mxu0 %v383
    %548 = vmatprep.subr.bf16.mxu0 0
    %549 = vmatpush2.bf16.msra.mxu0 %v382
    %550 = vmatprep.mubr.bf16.mxu0 %v46
    %551 = vmatmul.mubr.bf16.gmra.mxu0 %v45
    %v552 = vpop.f32.mrf.mxu0
    %v553 = vadd.f32 %v513, %v552
    %v554 = vpop.f32.mrf.mxu0
    %v555 = vpop.f32.mrf.mxu0
    %v556 = vpop.f32.mrf.mxu0
    %557 = vdwg.mxu0
    %v558 = vmax.f32 %v553, 0.0
    %v559 = vpack.c.bf16 %v558, %v558
    %v560 = vld [vmem:[%s3] sm:$0xf]
    %v561 = vld [vmem:[%s3 + $0x4] sm:$0xf]
    %v562 = vld [vmem:[%s3 + $0x8] sm:$0xf]
    %v563 = vld [vmem:[%s3 + $0xc] sm:$0xf]
    %v564 = vld [vmem:[%s3 + $0x10] sm:$0xf]
    %v565 = vld [vmem:[%s3 + $0x14] sm:$0xf]
    %v566 = vld [vmem:[%s3 + $0x18] sm:$0xf]
    %v567 = vld [vmem:[%s3 + $0x1c] sm:$0xf]
    %v568 = vld [vmem:[%s3 + $0x20] sm:$0xf]
    %v569 = vld [vmem:[%s3 + $0x24] sm:$0xf]
    %v570 = vld [vmem:[%s3 + $0x28] sm:$0xf]
    %v571 = vld [vmem:[%s3 + $0x2c] sm:$0xf]
    %v572 = vld [vmem:[%s3 + $0x30] sm:$0xf]
    %v573 = vld [vmem:[%s3 + $0x34] sm:$0xf]
    %v574 = vld [vmem:[%s3 + $0x38] sm:$0xf]
    %v575 = vld [vmem:[%s3 + $0x3c] sm:$0xf]
    %v576 = vld [vmem:[%s4] sm:$0x1]
    %v578 = vlaneseq
    %v579 = vshrl.u32 %v578, 7
    %v580 = vsub.s32 0, %v579
    %v581 = vrot.slane %v576, %v580
    %v599 = vunpack.c.l.b16 %v560
    %v600 = vunpack.c.l.b16 %v561
    %v601 = vunpack.c.l.b16 %v562
    %v602 = vunpack.c.l.b16 %v563
    %v603 = vunpack.c.l.b16 %v564
    %v604 = vunpack.c.l.b16 %v565
    %v605 = vunpack.c.l.b16 %v566
    %v606 = vunpack.c.l.b16 %v567
    %v607 = vunpack.c.l.b16 %v568
    %v608 = vunpack.c.l.b16 %v569
    %v609 = vunpack.c.l.b16 %v570
    %v610 = vunpack.c.l.b16 %v571
    %v611 = vunpack.c.l.b16 %v572
    %v612 = vunpack.c.l.b16 %v573
    %v613 = vunpack.c.l.b16 %v574
    %v614 = vunpack.c.l.b16 %v575
    %v615 = vpack.c.b16 %v600, %v599
    %v616 = vpack.c.b16 %v602, %v601
    %v617 = vpack.c.b16 %v604, %v603
    %v618 = vpack.c.b16 %v606, %v605
    %v619 = vpack.c.b16 %v608, %v607
    %v620 = vpack.c.b16 %v610, %v609
    %v621 = vpack.c.b16 %v612, %v611
    %v622 = vpack.c.b16 %v614, %v613
    %631 = vmatprep.subr.bf16.mxu0 0
    %632 = vmatpush1.bf16.msra.mxu0 %v622
    %633 = vmatprep.subr.bf16.mxu0 0
    %634 = vmatpush1.bf16.msra.mxu0 %v621
    %635 = vmatprep.subr.bf16.mxu0 0
    %636 = vmatpush1.bf16.msra.mxu0 %v620
    %637 = vmatprep.subr.bf16.mxu0 0
    %638 = vmatpush1.bf16.msra.mxu0 %v619
    %639 = vmatprep.subr.bf16.mxu0 0
    %640 = vmatpush1.bf16.msra.mxu0 %v618
    %641 = vmatprep.subr.bf16.mxu0 0
    %642 = vmatpush1.bf16.msra.mxu0 %v617
    %643 = vmatprep.subr.bf16.mxu0 0
    %644 = vmatpush1.bf16.msra.mxu0 %v616
    %645 = vmatprep.subr.bf16.mxu0 0
    %646 = vmatpush1.bf16.msra.mxu0 %v615
    %647 = vmatprep.subr.bf16.mxu0 0
    %648 = vmatpush2.bf16.msra.mxu0 0
    %649 = vmatprep.subr.bf16.mxu0 0
    %650 = vmatpush2.bf16.msra.mxu0 0
    %651 = vmatprep.subr.bf16.mxu0 0
    %652 = vmatpush2.bf16.msra.mxu0 0
    %653 = vmatprep.subr.bf16.mxu0 0
    %654 = vmatpush2.bf16.msra.mxu0 0
    %655 = vmatprep.subr.bf16.mxu0 0
    %656 = vmatpush2.bf16.msra.mxu0 0
    %657 = vmatprep.subr.bf16.mxu0 0
    %658 = vmatpush2.bf16.msra.mxu0 0
    %659 = vmatprep.subr.bf16.mxu0 0
    %660 = vmatpush2.bf16.msra.mxu0 0
    %661 = vmatprep.subr.bf16.mxu0 0
    %662 = vmatpush2.bf16.msra.mxu0 0
    %663 = vmatprep.mubr.bf16.mxu0 0
    %664 = vmatmul.mubr.bf16.gmra.mxu0 %v559
    %v665 = vpop.f32.mrf.mxu0
    %v666 = vadd.f32 %v581, %v665
    %v667 = vpop.f32.mrf.mxu0
    %v668 = vpop.f32.mrf.mxu0
    %v669 = vpop.f32.mrf.mxu0
    %670 = vdwg.mxu0
    %vm671 = vcmask 15360
    %672 = vst.msk [vmem:[%s5] sm:$0xff] %vm671, %v666
    // Predicated region
    $region26: #{tpu_custom_call.1} parent=1 // pred_check
      _
    $region27: #{tpu_custom_call.1} parent=1 // pred_check_branch
      %674 = sbr.rel (0) target = $region29
    $region28: #{tpu_custom_call.1} parent=1 // pred_region
      _
    $region29: #{tpu_custom_call.1} parent=1 // pred_fallthru
      _
    // Predicated region
    $region30: #{tpu_custom_call.1} parent=1 // pred_check
      _
    $region31: #{tpu_custom_call.1} parent=1 // pred_check_branch
      %676 = sbr.rel (0) target = $region33
    $region32: #{tpu_custom_call.1} parent=1 // pred_region
      _
    $region33: #{tpu_custom_call.1} parent=1 // pred_fallthru
      _
    %677 = vsyncpa [#allocation3], 1

</llo_original>
